<compile_context>
chip_gen: v7x
topology: tpu7x:2x2x1
jax: 0.10.0
libtpu: 0.0.40
codegen_flags: <defaults>
</compile_context>

<pallas_src>
import jax
import jax.numpy as jnp
from jax.experimental import pallas as pl
from jax.experimental.pallas import tpu as pltpu


def _round_up(x, n):
    return ((x + n - 1) // n) * n


def _make_kernel(tn, nj, compute_dtype, approx_recip):
    """Build the kernel body, specialized on static tile params."""

    def _partial(x_ref, wv_ref, w2_ref):
        x = x_ref[...]                                           # (tm, dim)
        # One MXU matmul against the interleaved [W | V] slab (N = 2*tn).
        ab = jnp.dot(x, wv_ref[...], preferred_element_type=jnp.float32)
        a = ab[:, :tn]
        b = ab[:, tn:]
        # silu(a) * b : exp and reciprocal both live on the EUP slot, which is
        # idle while the MXU streams, so the activation is effectively free.
        sig = pl.reciprocal(1.0 + jnp.exp(-a), approx=approx_recip)
        h = (a * sig) * b                                        # f32 (tm, tn)
        return jnp.dot(h.astype(compute_dtype), w2_ref[...],
                       preferred_element_type=jnp.float32)       # f32 (tm, dim)

    if nj == 1:
        def kernel(x_ref, wv_ref, w2_ref, o_ref):
            o_ref[...] = _partial(x_ref, wv_ref, w2_ref).astype(o_ref.dtype)
    else:
        def kernel(x_ref, wv_ref, w2_ref, o_ref, acc_ref):
            j = pl.program_id(1)
            partial = _partial(x_ref, wv_ref, w2_ref)

            @pl.when(j == 0)
            def _():
                acc_ref[...] = partial

            @pl.when(jnp.logical_and(j > 0, j < nj - 1))
            def _():
                acc_ref[...] += partial

            # Fused final reduction + store: skips one full acc read/write.
            @pl.when(j == nj - 1)
            def _():
                o_ref[...] = (acc_ref[...] + partial).astype(o_ref.dtype)

    return kernel


def swiglu_ffn(x, w_t, v_t, w2_t, *, tm=None, tn=None,
               compute_dtype=jnp.bfloat16):
    """Fused SwiGLU FFN.

    x:    [..., dim]
    w_t:  [dim, hidden]   (nn.Linear(dim, hidden).weight, transposed)
    v_t:  [dim, hidden]
    w2_t: [hidden, dim]   (nn.Linear(hidden, dim).weight, transposed)
    compute_dtype: dtype fed to the MXU (bf16 by default; f32 accumulation).
    """
    orig_shape = x.shape
    dim = orig_shape[-1]
    hidden = w_t.shape[1]
    assert w_t.shape == (dim, hidden)
    assert v_t.shape == (dim, hidden)
    assert w2_t.shape == (hidden, dim)

    compute_dtype = jnp.dtype(compute_dtype)
    out_dtype = x.dtype
    cb = compute_dtype.itemsize
    ob = jnp.dtype(out_dtype).itemsize

    # Sublane granule for the token tile: 8 (f32) / 16 (bf16) / 32 (1-byte).
    min_b = min(cb, ob)
    granule = 32 if min_b == 1 else (16 if min_b == 2 else 8)

    x2d = x.reshape(-1, dim)
    m = x2d.shape[0]

    # ---- Generation-aware tile sizing -----------------------------------
    try:
        vmem_cap = int(pltpu.get_tpu_info().vmem_capacity_bytes)
    except Exception:
        vmem_cap = 64 * 1024 * 1024              # conservative (v7x per-TC)
    vmem_cap = max(32 * 1024 * 1024, min(vmem_cap, 128 * 1024 * 1024))
    budget = vmem_cap - 4 * 1024 * 1024          # compiler headroom

    if tm is None:
        # Arithmetic intensity of weight streaming ~ tm flops/byte:
        # v5e/v6e (128 MiB VMEM) -> 512; v7x (64 MiB) -> 384 suffices.
        tm = 512 if vmem_cap >= 96 * 1024 * 1024 else 384
    if tn is None:
        tn = 512 if (cb <= 2 or vmem_cap >= 96 * 1024 * 1024) else 256
    tn = max(128, (int(tn) // 128) * 128)
    tn = min(tn, _round_up(hidden, 128))
    tm = max(granule, min(_round_up(int(tm), granule), _round_up(m, granule)))

    def vmem_est(tm_, tn_):
        return (2 * tm_ * dim * cb                      # x tile (dbl-buffered)
                + 2 * dim * (2 * tn_) * cb              # [W|V] slab
                + 2 * tn_ * dim * cb                    # W2 slab
                + 2 * tm_ * dim * ob                    # output tile
                + tm_ * dim * 4                         # f32 accumulator
                + 3 * tm_ * tn_ * 4 + tm_ * dim * 4)    # live f32 temporaries

    while vmem_est(tm, tn) > budget:
        if tn > 256:
            tn -= 128
        elif tm > 4 * granule:
            tm = max(granule, _round_up(tm // 2, granule))
        elif tn > 128:
            tn -= 128
        elif tm > granule:
            tm = max(granule, _round_up(tm // 2, granule))
        else:
            break

    # Keep >= 2 token tiles so the 'parallel' axis can occupy both
    # TensorCores on dual-TC chips (v7x).
    m_pad = _round_up(m, tm)
    while m_pad // tm < 2 and tm > granule:
        tm = max(granule, _round_up(tm // 2, granule))
        m_pad = _round_up(m, tm)

    # ---- Pad ragged dims (zero padding is inert for bias-free matmuls) ---
    # TODO(synk): handle the ragged token tail with a masked store instead of
    # the extra pad/slice HBM pass over x/out.
    if m_pad != m:
        x2d = jnp.pad(x2d, ((0, m_pad - m), (0, 0)))
    hidden_pad = _round_up(hidden, tn)
    if hidden_pad != hidden:
        w_t = jnp.pad(w_t, ((0, 0), (0, hidden_pad - hidden)))
        v_t = jnp.pad(v_t, ((0, 0), (0, hidden_pad - hidden)))
        w2_t = jnp.pad(w2_t, ((0, hidden_pad - hidden), (0, 0)))
    nj = hidden_pad // tn

    # Interleave W and V slab-wise into one [dim, 2*hidden_pad] operand so
    # every grid step issues one weight DMA and one MXU matmul (N = 2*tn).
    # (In a real model the bf16 cast / interleave happens once at load time.)
    x2d = x2d.astype(compute_dtype)
    w3 = w_t.astype(compute_dtype).reshape(dim, nj, tn)
    v3 = v_t.astype(compute_dtype).reshape(dim, nj, tn)
    wv = jnp.stack([w3, v3], axis=2).reshape(dim, 2 * hidden_pad)
    w2c = w2_t.astype(compute_dtype)

    grid = (m_pad // tm, nj)

    # Serpentine hidden traversal: odd token tiles walk slabs in reverse so
    # the last slab is reused across the token-tile boundary (sum order only).
    def _j_eff(i, j):
        return j + (i % 2) * (nj - 1 - 2 * j)

    in_specs = [
        pl.BlockSpec((tm, dim), lambda i, j: (i, 0)),                 # x tile
        pl.BlockSpec((dim, 2 * tn), lambda i, j: (0, _j_eff(i, j))),  # [W|V]
        pl.BlockSpec((tn, dim), lambda i, j: (_j_eff(i, j), 0)),      # W2
    ]
    out_specs = pl.BlockSpec((tm, dim), lambda i, j: (i, 0))
    scratch_shapes = [pltpu.VMEM((tm, dim), jnp.float32)] if nj > 1 else []

    vmem_limit = int(min(vmem_cap - 2 * 1024 * 1024,
                         max(2 * vmem_est(tm, tn), 32 * 1024 * 1024)))

    cost = pl.CostEstimate(
        flops=2 * m_pad * dim * hidden_pad * 3,          # W(x), V(x), W2(h)
        transcendentals=m_pad * hidden_pad,              # exp
        bytes_accessed=(m_pad * dim * (cb + ob)          # x in, out
                        + grid[0] * 3 * dim * hidden_pad * cb),  # weights/tile
    )

    kernel = _make_kernel(tn, nj, compute_dtype, approx_recip=(cb < 4))

    out = pl.pallas_call(
        kernel,
        out_shape=jax.ShapeDtypeStruct((m_pad, dim), out_dtype),
        grid_spec=pltpu.PrefetchScalarGridSpec(
            num_scalar_prefetch=0,
            grid=grid,
            in_specs=in_specs,
            out_specs=out_specs,
            scratch_shapes=scratch_shapes,
        ),
        compiler_params=pltpu.CompilerParams(
            dimension_semantics=("parallel", "arbitrary"),
            vmem_limit_bytes=vmem_limit,
        ),
        cost_estimate=cost,
    )(x2d, wv, w2c)

    if m_pad != m:
        out = out[:m]
    return out.reshape(orig_shape)


def _reference(x, w_t, v_t, w2_t):
    a = x @ w_t
    b = x @ v_t
    h = (a * jax.nn.sigmoid(a)) * b
    return h @ w2_t


if __name__ == "__main__":
    # Small shapes implied by the module: x: [batch, seq, dim].
    # hidden=384 with tn=256 exercises the hidden-padding path (pad to 512,
    # two slabs -> accumulator + serpentine); batch*seq=48 with tm=32
    # exercises the ragged token tail and the >=2 token-tile requirement.
    batch, seq, dim, hidden = 2, 24, 128, 384

    key = jax.random.PRNGKey(0)
    kx, kw, kv, kw2 = jax.random.split(key, 4)

    x = jax.random.normal(kx, (batch, seq, dim), dtype=jnp.float32)
    # nn.Linear(dim, hidden).weight has shape (hidden, dim); stored transposed.
    w_t = jax.random.normal(kw, (dim, hidden), dtype=jnp.float32) * 0.05
    v_t = jax.random.normal(kv, (dim, hidden), dtype=jnp.float32) * 0.05
    w2_t = jax.random.normal(kw2, (hidden, dim), dtype=jnp.float32) * 0.05

    ref = _reference(x, w_t, v_t, w2_t)

    # 1) f32 MXU path with forced small tiles (multi-slab accumulator,
    #    serpentine traversal, hidden + token padding).
    out_f32 = swiglu_ffn(x, w_t, v_t, w2_t, tm=32, tn=256,
                         compute_dtype=jnp.float32)
    out_f32 = jax.block_until_ready(out_f32)
    assert out_f32.shape == (batch, seq, dim)
    assert jnp.allclose(out_f32, ref, atol=1e-3, rtol=1e-3), "f32 mismatch"

    # 2) Default performance path: bf16 MXU operands, auto tile selection.
    out_bf = jax.block_until_ready(swiglu_ffn(x, w_t, v_t, w2_t))
    assert out_bf.shape == (batch, seq, dim)
    max_err = float(jnp.max(jnp.abs(out_bf.astype(jnp.float32) - ref)))
    assert max_err < 8e-2, f"bf16 path error too large: {max_err}"

    print("KERNEL_OK")
</pallas_src>

<mosaic_0001>
module attributes {stable_mosaic.version = 11 : i64} {
  func.func @kernel(%arg0: i32, %arg1: i32, %arg2: memref<32x128xf32, #tpu.memory_space<vmem>>, %arg3: memref<128x512xf32, #tpu.memory_space<vmem>>, %arg4: memref<256x128xf32, #tpu.memory_space<vmem>>, %arg5: memref<32x128xf32, #tpu.memory_space<vmem>>, %arg6: memref<32x128xf32, #tpu.memory_space<vmem>>) attributes {dimension_semantics = [#tpu.dimension_semantics<parallel>, #tpu.dimension_semantics<arbitrary>], iteration_bounds = array<i64: 2, 2>, scalar_prefetch = 0 : i64, scratch_operands = 1 : i64, tpu.core_type = #tpu.core_type<tc>, window_params = [{transform_indices = @transform_0, window_bounds = array<i64: 32, 128>}, {transform_indices = @transform_1, window_bounds = array<i64: 128, 512>}, {transform_indices = @transform_2, window_bounds = array<i64: 256, 128>}, {transform_indices = @transform_3, window_bounds = array<i64: 32, 128>}]} {
    %c0 = arith.constant 0 : index
    %c0_0 = arith.constant 0 : index
    %0 = vector.load %arg2[%c0, %c0_0] : memref<32x128xf32, #tpu.memory_space<vmem>>, vector<32x128xf32>
    %c0_1 = arith.constant 0 : index
    %c0_2 = arith.constant 0 : index
    %1 = vector.load %arg3[%c0_1, %c0_2] : memref<128x512xf32, #tpu.memory_space<vmem>>, vector<128x512xf32>
    %cst = arith.constant dense<0.000000e+00> : vector<32x512xf32>
    %2 = tpu.matmul %0, %1, %cst {dimension_numbers = #tpu.dot_dimension_numbers<[1], [0], [0], [1], [0, 0, 1, 1], [], []>} : vector<32x128xf32>, vector<128x512xf32>, vector<32x512xf32> -> vector<32x512xf32>
    %3 = vector.extract_strided_slice %2 {offsets = [0, 0], sizes = [32, 256], strides = [1, 1]} : vector<32x512xf32> to vector<32x256xf32>
    %4 = vector.extract_strided_slice %2 {offsets = [0, 256], sizes = [32, 256], strides = [1, 1]} : vector<32x512xf32> to vector<32x256xf32>
    %cst_3 = arith.constant 0.000000e+00 : f32
    %5 = vector.broadcast %cst_3 : f32 to vector<32x256xf32>
    %6 = arith.subf %5, %3 : vector<32x256xf32>
    %7 = math.exp %6 : vector<32x256xf32>
    %cst_4 = arith.constant 1.000000e+00 : f32
    %8 = vector.broadcast %cst_4 : f32 to vector<32x256xf32>
    %9 = arith.addf %8, %7 : vector<32x256xf32>
    %10 = tpu.reciprocal %9 : vector<32x256xf32> -> vector<32x256xf32>
    %11 = arith.mulf %3, %10 : vector<32x256xf32>
    %12 = arith.mulf %11, %4 : vector<32x256xf32>
    %c0_5 = arith.constant 0 : index
    %c0_6 = arith.constant 0 : index
    %13 = vector.load %arg4[%c0_5, %c0_6] : memref<256x128xf32, #tpu.memory_space<vmem>>, vector<256x128xf32>
    %cst_7 = arith.constant dense<0.000000e+00> : vector<32x128xf32>
    %14 = tpu.matmul %12, %13, %cst_7 {dimension_numbers = #tpu.dot_dimension_numbers<[1], [0], [0], [1], [0, 0, 1, 1], [], []>} : vector<32x256xf32>, vector<256x128xf32>, vector<32x128xf32> -> vector<32x128xf32>
    %c0_i32 = arith.constant 0 : i32
    %15 = arith.cmpi eq, %arg1, %c0_i32 : i32
    %16 = arith.extui %15 : i1 to i32
    %c0_i32_8 = arith.constant 0 : i32
    %17 = arith.cmpi ne, %16, %c0_i32_8 : i32
    scf.if %17 {
      %c0_13 = arith.constant 0 : index
      %c0_14 = arith.constant 0 : index
      %26 = vector.load %arg6[%c0_13, %c0_14] : memref<32x128xf32, #tpu.memory_space<vmem>>, vector<32x128xf32>
      tpu.vector_store %arg6[%c0_13, %c0_14], %14 {strides = array<i32>} : memref<32x128xf32, #tpu.memory_space<vmem>>, vector<32x128xf32>,
    } else {
    }
    %c0_i32_9 = arith.constant 0 : i32
    %18 = arith.cmpi sgt, %arg1, %c0_i32_9 : i32
    %c1_i32 = arith.constant 1 : i32
    %19 = arith.cmpi slt, %arg1, %c1_i32 : i32
    %20 = arith.andi %18, %19 : i1
    %21 = arith.extui %20 : i1 to i32
    %c0_i32_10 = arith.constant 0 : i32
    %22 = arith.cmpi ne, %21, %c0_i32_10 : i32
    scf.if %22 {
      %c0_13 = arith.constant 0 : index
      %c0_14 = arith.constant 0 : index
      %26 = vector.load %arg6[%c0_13, %c0_14] : memref<32x128xf32, #tpu.memory_space<vmem>>, vector<32x128xf32>
      %27 = arith.addf %26, %14 : vector<32x128xf32>
      %c0_15 = arith.constant 0 : index
      %c0_16 = arith.constant 0 : index
      %28 = vector.load %arg6[%c0_15, %c0_16] : memref<32x128xf32, #tpu.memory_space<vmem>>, vector<32x128xf32>
      tpu.vector_store %arg6[%c0_15, %c0_16], %27 {strides = array<i32>} : memref<32x128xf32, #tpu.memory_space<vmem>>, vector<32x128xf32>,
    } else {
    }
    %c1_i32_11 = arith.constant 1 : i32
    %23 = arith.cmpi eq, %arg1, %c1_i32_11 : i32
    %24 = arith.extui %23 : i1 to i32
    %c0_i32_12 = arith.constant 0 : i32
    %25 = arith.cmpi ne, %24, %c0_i32_12 : i32
    scf.if %25 {
      %c0_13 = arith.constant 0 : index
      %c0_14 = arith.constant 0 : index
      %26 = vector.load %arg6[%c0_13, %c0_14] : memref<32x128xf32, #tpu.memory_space<vmem>>, vector<32x128xf32>
      %27 = arith.addf %26, %14 : vector<32x128xf32>
      %c0_15 = arith.constant 0 : index
      %c0_16 = arith.constant 0 : index
      %28 = vector.load %arg5[%c0_15, %c0_16] : memref<32x128xf32, #tpu.memory_space<vmem>>, vector<32x128xf32>
      tpu.vector_store %arg5[%c0_15, %c0_16], %27 {strides = array<i32>} : memref<32x128xf32, #tpu.memory_space<vmem>>, vector<32x128xf32>,
    } else {
    }
    return
  }
  func.func @transform_0(%arg0: i32, %arg1: i32) -> (i32, i32) {
    %c0_i32 = arith.constant 0 : i32
    %c0_i32_0 = arith.constant 0 : i32
    return %arg0, %c0_i32 : i32, i32
  }
  func.func @transform_1(%arg0: i32, %arg1: i32) -> (i32, i32) {
    %c2_i32 = arith.constant 2 : i32
    %c0_i32 = arith.constant 0 : i32
    %0 = arith.cmpi eq, %c2_i32, %c0_i32 : i32
    %c1_i32 = arith.constant 1 : i32
    %1 = arith.select %0, %c1_i32, %c2_i32 : i32
    %2 = arith.remsi %arg0, %1 : i32
    %c0_i32_0 = arith.constant 0 : i32
    %3 = arith.cmpi ne, %2, %c0_i32_0 : i32
    %c0_i32_1 = arith.constant 0 : i32
    %4 = arith.cmpi slt, %2, %c0_i32_1 : i32
    %c0_i32_2 = arith.constant 0 : i32
    %5 = arith.cmpi slt, %1, %c0_i32_2 : i32
    %6 = arith.xori %4, %5 : i1
    %7 = arith.andi %6, %3 : i1
    %8 = arith.addi %2, %1 : i32
    %9 = arith.select %7, %8, %2 : i32
    %c2_i32_3 = arith.constant 2 : i32
    %10 = arith.muli %c2_i32_3, %arg1 : i32
    %c1_i32_4 = arith.constant 1 : i32
    %11 = arith.subi %c1_i32_4, %10 : i32
    %12 = arith.muli %9, %11 : i32
    %13 = arith.addi %arg1, %12 : i32
    %c0_i32_5 = arith.constant 0 : i32
    %c0_i32_6 = arith.constant 0 : i32
    return %c0_i32_5, %13 : i32, i32
  }
  func.func @transform_2(%arg0: i32, %arg1: i32) -> (i32, i32) {
    %c2_i32 = arith.constant 2 : i32
    %c0_i32 = arith.constant 0 : i32
    %0 = arith.cmpi eq, %c2_i32, %c0_i32 : i32
    %c1_i32 = arith.constant 1 : i32
    %1 = arith.select %0, %c1_i32, %c2_i32 : i32
    %2 = arith.remsi %arg0, %1 : i32
    %c0_i32_0 = arith.constant 0 : i32
    %3 = arith.cmpi ne, %2, %c0_i32_0 : i32
    %c0_i32_1 = arith.constant 0 : i32
    %4 = arith.cmpi slt, %2, %c0_i32_1 : i32
    %c0_i32_2 = arith.constant 0 : i32
    %5 = arith.cmpi slt, %1, %c0_i32_2 : i32
    %6 = arith.xori %4, %5 : i1
    %7 = arith.andi %6, %3 : i1
    %8 = arith.addi %2, %1 : i32
    %9 = arith.select %7, %8, %2 : i32
    %c2_i32_3 = arith.constant 2 : i32
    %10 = arith.muli %c2_i32_3, %arg1 : i32
    %c1_i32_4 = arith.constant 1 : i32
    %11 = arith.subi %c1_i32_4, %10 : i32
    %12 = arith.muli %9, %11 : i32
    %13 = arith.addi %arg1, %12 : i32
    %c0_i32_5 = arith.constant 0 : i32
    %c0_i32_6 = arith.constant 0 : i32
    return %13, %c0_i32_5 : i32, i32
  }
  func.func @transform_3(%arg0: i32, %arg1: i32) -> (i32, i32) {
    %c0_i32 = arith.constant 0 : i32
    %c0_i32_0 = arith.constant 0 : i32
    return %arg0, %c0_i32 : i32, i32
  }
}

</mosaic_0001>

<llo_original>
// kernel: tpu_custom_call.1
$region0: #{tpu_custom_call.1}
  #allocation0 [shape = 'u32[]', space=smem, size = 0x4, offset = 0x4, fixed_abs, tag = 'smem constant byte address 0x4 - core index']
  #allocation1 [shape = 'u32[144,128]{1,0:T(1,128)}', space=vmem, size = 0x12000, scoped, tag = 'internal scratch']
  #allocation2 [shape = 'f32[32,128]{1,0:T(8,128)}', space=vmem, size = 0x4000, scoped, tag = 'scratch operand']
  %s0 = inlined_call_operand.hbm [shape: f32[64,128], index: 0, kind: input, shape index: {}]
  %s1 = inlined_call_operand.hbm [shape: f32[128,1024], index: 1, kind: input, shape index: {}]
  %s2 = inlined_call_operand.hbm [shape: f32[512,128], index: 2, kind: input, shape index: {}]
  %s3 = inlined_call_operand.hbm [shape: f32[64,128], index: 3, kind: output, shape index: {}]
  %s4 = sld [smem:[#allocation0]]
  $region69: #{tpu_custom_call.1} parent=0
    _
  %s6 = ssub.s32 1, %s4
  %s7 = scalar_select 0, %s6, %s4
  $region1: #{tpu_custom_call.1} parent=0
    #allocation3 [shape = 'u8[32768]{0}', space=vmem, size = 0x8000, scoped, tag = 'input window, operand 0']
    #allocation4 [shape = 's32[2]{0}', space=sflag, size = 0x8, scoped, tag = 'scoped memory for tpu_custom_call.1']
    #allocation5 [shape = 's32[2]{0}', space=sflag, size = 0x8, scoped, tag = 'scoped memory for tpu_custom_call.1']
    #allocation6 [shape = 'u8[524288]{0}', space=vmem, size = 0x80000, scoped, tag = 'input window, operand 1']
    #allocation7 [shape = 's32[2]{0}', space=sflag, size = 0x8, scoped, tag = 'scoped memory for tpu_custom_call.1']
    #allocation8 [shape = 'u8[262144]{0}', space=vmem, size = 0x40000, scoped, tag = 'input window, operand 2']
    #allocation9 [shape = 'u8[32768]{0}', space=vmem, size = 0x8000, scoped, tag = 'output window, operand 0']
    %8 = vsyncpa [#allocation4], 0
    %s9 = scalar_lea.sflag [#allocation4], 1
    %10 = vsyncpa %s9, 0
    %11 = vsyncpa [#allocation7], 0
    %s12 = scalar_lea.sflag [#allocation7], 1
    %13 = vsyncpa %s12, 0
    %14 = vsyncpa [#allocation5], 0
    %s15 = scalar_lea.sflag [#allocation5], 1
    %16 = vsyncpa %s15, 0
    loop: start=0, step=1, limit=6
    $region2: #{tpu_custom_call.1} parent=1 // loop_pre_header
      _
    $region3: #{tpu_custom_call.1} parent=1 // loop_header
      %s18 = sphi 0, %s22
      %p19 = scmp.ge.s32.totalorder %s18, 6
      %s25 = sphi 0, %s37
      %s26 = sphi 0, %s33
      %s27 = sphi 0, %s25
      %s28 = sphi 0, %s26
      %s29 = sphi 0, %s27
      %s30 = sphi 0, %s28
      %s40 = sphi 0, %s42
      %s43 = sphi 0, %s40
      %s44 = sphi 0, %s43
      %s60 = sphi 0, %s44
      %s98 = sphi 0, %s100
      %s101 = sphi 0, %s98
      %s102 = sphi 0, %s101
      %s118 = sphi 0, %s102
      %s156 = sphi 0, %s158
      %s159 = sphi 0, %s156
      %s160 = sphi 0, %s159
      %s176 = sphi 0, %s160
      %s182 = sphi 0, %s184
      %s185 = sphi 0, %s182
      %s186 = sphi 0, %s185
      %s202 = sphi 0, %s186
    $region4: #{tpu_custom_call.1} parent=1 // loop_header_branch
      %21 = sbr.rel (%p19) target = $region8
    $region5: #{tpu_custom_call.1} parent=1 // loop_body
      %s23 = ssub.s32 %s18, 1
      %s24 = ssub.s32 %s18, 2
      %s31 = sadd.s32 1, %s26
      %p32 = scmp.ge.s32.totalorder %s31, 2
      %s33 = scalar_select %p32, 0, %s31
      %s34 = sadd.s32 1, %s25
      %s35 = scalar_select %p32, %s34, %s25
      %p36 = scmp.ge.s32.totalorder %s35, 2
      %s37 = scalar_select %p36, 0, %s35
      %s38 = ssub.s32 %s25, %s37
      %p39 = scmp.eq.s32.totalorder %s38, 0
      %s41 = sadd.s32 %s40, 1
      %s42 = scalar_select %p39, %s40, %s41
      %p45 = pneg %p39
      %p46 = scmp.eq.s32.totalorder %s18, 3
      %p47 = por %p45, %p46
      %p48 = scmp.ne.s32.totalorder %s40, %s43
      %p49 = scmp.eq.s32.totalorder %s18, 0
      %p50 = por %p48, %p49
      %p51 = scmp.ne.s32.totalorder %s40, %s43
      %p52 = scmp.eq.s32.totalorder %s23, 3
      %p53 = por %p51, %p52
      %p54 = scmp.ne.s32.totalorder %s43, %s44
      %p55 = scmp.eq.s32.totalorder %s23, 0
      %p56 = por %p54, %p55
      %p57 = scmp.ne.s32.totalorder %s43, %s44
      %p58 = scmp.eq.s32.totalorder %s24, 3
      %p59 = por %p57, %p58
      %p61 = scmp.ne.s32.totalorder %s44, %s60
      %p62 = scmp.eq.s32.totalorder %s24, 0
      %p63 = por %p61, %p62
      %p64 = scmp.lt.s32.totalorder %s25, 0
      %s65 = ssub.s32 0, %s25
      %s66 = scalar_select %p64, %s65, %s25
      %s67 = sand.u32 %s66, 1
      %s68 = ssub.s32 0, %s67
      %s69 = scalar_select %p64, %s68, %s67
      %p70 = scmp.ne.s32.totalorder %s69, 0
      %p71 = scmp.lt.s32.totalorder %s69, 0
      %p72 = pnand %p71, %p70
      %p73 = pneg %p72
      %s74 = sadd.s32 %s69, 2
      %s75 = scalar_select %p73, %s74, %s69
      %s76 = smul.u32 %s26, 2
      %s77 = ssub.s32 1, %s76
      %s78 = smul.u32 %s75, %s77
      %s79 = sadd.s32 %s26, %s78
      %p80 = scmp.lt.s32.totalorder %s37, 0
      %s81 = ssub.s32 0, %s37
      %s82 = scalar_select %p80, %s81, %s37
      %s83 = sand.u32 %s82, 1
      %s84 = ssub.s32 0, %s83
      %s85 = scalar_select %p80, %s84, %s83
      %p86 = scmp.ne.s32.totalorder %s85, 0
      %p87 = scmp.lt.s32.totalorder %s85, 0
      %p88 = pnand %p87, %p86
      %p89 = pneg %p88
      %s90 = sadd.s32 %s85, 2
      %s91 = scalar_select %p89, %s90, %s85
      %s92 = smul.u32 %s33, 2
      %s93 = ssub.s32 1, %s92
      %s94 = smul.u32 %s91, %s93
      %s95 = sadd.s32 %s33, %s94
      %s96 = ssub.s32 %s79, %s95
      %p97 = scmp.eq.s32.totalorder %s96, 0
      %s99 = sadd.s32 %s98, 1
      %s100 = scalar_select %p97, %s98, %s99
      %p103 = pneg %p97
      %p104 = scmp.eq.s32.totalorder %s18, 3
      %p105 = por %p103, %p104
      %p106 = scmp.ne.s32.totalorder %s98, %s101
      %p107 = scmp.eq.s32.totalorder %s18, 0
      %p108 = por %p106, %p107
      %p109 = scmp.ne.s32.totalorder %s98, %s101
      %p110 = scmp.eq.s32.totalorder %s23, 3
      %p111 = por %p109, %p110
      %p112 = scmp.ne.s32.totalorder %s101, %s102
      %p113 = scmp.eq.s32.totalorder %s23, 0
      %p114 = por %p112, %p113
      %p115 = scmp.ne.s32.totalorder %s101, %s102
      %p116 = scmp.eq.s32.totalorder %s24, 3
      %p117 = por %p115, %p116
      %p119 = scmp.ne.s32.totalorder %s102, %s118
      %p120 = scmp.eq.s32.totalorder %s24, 0
      %p121 = por %p119, %p120
      %p122 = scmp.lt.s32.totalorder %s25, 0
      %s123 = ssub.s32 0, %s25
      %s124 = scalar_select %p122, %s123, %s25
      %s125 = sand.u32 %s124, 1
      %s126 = ssub.s32 0, %s125
      %s127 = scalar_select %p122, %s126, %s125
      %p128 = scmp.ne.s32.totalorder %s127, 0
      %p129 = scmp.lt.s32.totalorder %s127, 0
      %p130 = pnand %p129, %p128
      %p131 = pneg %p130
      %s132 = sadd.s32 %s127, 2
      %s133 = scalar_select %p131, %s132, %s127
      %s134 = smul.u32 %s26, 2
      %s135 = ssub.s32 1, %s134
      %s136 = smul.u32 %s133, %s135
      %s137 = sadd.s32 %s26, %s136
      %p138 = scmp.lt.s32.totalorder %s37, 0
      %s139 = ssub.s32 0, %s37
      %s140 = scalar_select %p138, %s139, %s37
      %s141 = sand.u32 %s140, 1
      %s142 = ssub.s32 0, %s141
      %s143 = scalar_select %p138, %s142, %s141
      %p144 = scmp.ne.s32.totalorder %s143, 0
      %p145 = scmp.lt.s32.totalorder %s143, 0
      %p146 = pnand %p145, %p144
      %p147 = pneg %p146
      %s148 = sadd.s32 %s143, 2
      %s149 = scalar_select %p147, %s148, %s143
      %s150 = smul.u32 %s33, 2
      %s151 = ssub.s32 1, %s150
      %s152 = smul.u32 %s149, %s151
      %s153 = sadd.s32 %s33, %s152
      %s154 = ssub.s32 %s137, %s153
      %p155 = scmp.eq.s32.totalorder %s154, 0
      %s157 = sadd.s32 %s156, 1
      %s158 = scalar_select %p155, %s156, %s157
      %p161 = pneg %p155
      %p162 = scmp.eq.s32.totalorder %s18, 3
      %p163 = por %p161, %p162
      %p164 = scmp.ne.s32.totalorder %s156, %s159
      %p165 = scmp.eq.s32.totalorder %s18, 0
      %p166 = por %p164, %p165
      %p167 = scmp.ne.s32.totalorder %s156, %s159
      %p168 = scmp.eq.s32.totalorder %s23, 3
      %p169 = por %p167, %p168
      %p170 = scmp.ne.s32.totalorder %s159, %s160
      %p171 = scmp.eq.s32.totalorder %s23, 0
      %p172 = por %p170, %p171
      %p173 = scmp.ne.s32.totalorder %s159, %s160
      %p174 = scmp.eq.s32.totalorder %s24, 3
      %p175 = por %p173, %p174
      %p177 = scmp.ne.s32.totalorder %s160, %s176
      %p178 = scmp.eq.s32.totalorder %s24, 0
      %p179 = por %p177, %p178
      %s180 = ssub.s32 %s25, %s37
      %p181 = scmp.eq.s32.totalorder %s180, 0
      %s183 = sadd.s32 %s182, 1
      %s184 = scalar_select %p181, %s182, %s183
      %p187 = pneg %p181
      %p188 = scmp.eq.s32.totalorder %s18, 3
      %p189 = por %p187, %p188
      %p190 = scmp.ne.s32.totalorder %s182, %s185
      %p191 = scmp.eq.s32.totalorder %s18, 0
      %p192 = por %p190, %p191
      %p193 = scmp.ne.s32.totalorder %s182, %s185
      %p194 = scmp.eq.s32.totalorder %s23, 3
      %p195 = por %p193, %p194
      %p196 = scmp.ne.s32.totalorder %s185, %s186
      %p197 = scmp.eq.s32.totalorder %s23, 0
      %p198 = por %p196, %p197
      %p199 = scmp.ne.s32.totalorder %s185, %s186
      %p200 = scmp.eq.s32.totalorder %s24, 3
      %p201 = por %p199, %p200
      %p203 = scmp.ne.s32.totalorder %s186, %s202
      %p204 = scmp.eq.s32.totalorder %s24, 0
      %p205 = por %p203, %p204
      %p206 = scmp.le.s32.totalorder 1, %s18
      %p207 = scmp.lt.s32.totalorder %s18, 5
      %p208 = pnand %p206, %p207
      %p209 = pneg %p208
      // Predicated region
      $region9: #{tpu_custom_call.1} parent=5 // pred_check
        _
      $region10: #{tpu_custom_call.1} parent=5 // pred_check_branch
        %211 = sbr.rel (%p208) target = $region12
      $region11: #{tpu_custom_call.1} parent=5 // pred_region
        %s212 = ssub.s32 %s18, 1
      $region12: #{tpu_custom_call.1} parent=5 // pred_fallthru
        _
      %p213 = scmp.lt.s32.totalorder %s18, 4
      // Predicated region
      $region13: #{tpu_custom_call.1} parent=5 // pred_check
        %p214 = pneg %p213
      $region14: #{tpu_custom_call.1} parent=5 // pred_check_branch
        %216 = sbr.rel (%p214) target = $region16
      $region15: #{tpu_custom_call.1} parent=5 // pred_region
        // Predicated region
        $region17: #{tpu_custom_call.1} parent=15 // pred_check
          %p217 = pneg %p50
        $region18: #{tpu_custom_call.1} parent=15 // pred_check_branch
          %219 = sbr.rel (%p217) target = $region20
        $region19: #{tpu_custom_call.1} parent=15 // pred_region
          %s220 = sand.u32 %s40, 1
          %s221 = scalar_lea.sflag [#allocation4], %s220
          %s222 = sand.u32 %s40, 1
          %s223 = smul.addr %s222, 32
          %s224 = scalar_lea.vmem [#allocation3], %s223
          %s225 = smul.u32 4, %s25
          %s227 = ssub.s32 512, 512
          %228 = vsyncadd %s221, %s227
          %s229 = smul.addr %s225, 128
          %s230 = scalar_lea.hbm %s0, %s229
          %s231 = sshll.u32 %s224, 4
          %s232 = int_to_ptr.vmem [resolvable:$true] %s231
          %237 = dma.hbm_to_vmem [thread:$0]  %s230, 512, %s232, %s221, 128, 128, 8
        $region20: #{tpu_custom_call.1} parent=15 // pred_fallthru
          _
        // Predicated region
        $region21: #{tpu_custom_call.1} parent=15 // pred_check
          %p238 = pneg %p108
        $region22: #{tpu_custom_call.1} parent=15 // pred_check_branch
          %240 = sbr.rel (%p238) target = $region24
        $region23: #{tpu_custom_call.1} parent=15 // pred_region
          %s241 = sand.u32 %s18, 1
          %s242 = scalar_lea.sflag [#allocation7], %s241
          %s243 = sand.u32 %s98, 1
          %s244 = smul.addr %s243, 512
          %s245 = scalar_lea.vmem [#allocation6], %s244
          %p246 = scmp.lt.s32.totalorder %s25, 0
          %s247 = ssub.s32 0, %s25
          %s248 = scalar_select %p246, %s247, %s25
          %s249 = sand.u32 %s248, 1
          %s250 = ssub.s32 0, %s249
          %s251 = scalar_select %p246, %s250, %s249
          %p252 = scmp.ne.s32.totalorder %s251, 0
          %p253 = scmp.lt.s32.totalorder %s251, 0
          %p254 = pnand %p253, %p252
          %p255 = pneg %p254
          %s256 = sadd.s32 %s251, 2
          %s257 = scalar_select %p255, %s256, %s251
          %s258 = smul.u32 %s26, 2
          %s259 = ssub.s32 1, %s258
          %s260 = smul.u32 %s257, %s259
          %s261 = sadd.s32 %s26, %s260
          %s262 = smul.u32 4, %s261
          %s264 = ssub.s32 8192, 8192
          %265 = vsyncadd %s242, %s264
          %s266 = smul.addr %s262, 128
          %s267 = scalar_lea.hbm %s1, %s266
          %s268 = sshll.u32 %s245, 4
          %s269 = int_to_ptr.vmem [resolvable:$true] %s268
          %274 = dma.hbm_to_vmem [thread:$0]  %s267, 8192, %s269, %s242, 1024, 512, 32
        $region24: #{tpu_custom_call.1} parent=15 // pred_fallthru
          _
        // Predicated region
        $region25: #{tpu_custom_call.1} parent=15 // pred_check
          %p275 = pneg %p166
        $region26: #{tpu_custom_call.1} parent=15 // pred_check_branch
          %277 = sbr.rel (%p275) target = $region28
        $region27: #{tpu_custom_call.1} parent=15 // pred_region
          %s278 = sand.u32 %s18, 1
          %s279 = scalar_lea.sflag [#allocation7], %s278
          %s280 = sand.u32 %s156, 1
          %s281 = smul.addr %s280, 256
          %s282 = scalar_lea.vmem [#allocation8], %s281
          %p283 = scmp.lt.s32.totalorder %s25, 0
          %s284 = ssub.s32 0, %s25
          %s285 = scalar_select %p283, %s284, %s25
          %s286 = sand.u32 %s285, 1
          %s287 = ssub.s32 0, %s286
          %s288 = scalar_select %p283, %s287, %s286
          %p289 = scmp.ne.s32.totalorder %s288, 0
          %p290 = scmp.lt.s32.totalorder %s288, 0
          %p291 = pnand %p290, %p289
          %p292 = pneg %p291
          %s293 = sadd.s32 %s288, 2
          %s294 = scalar_select %p292, %s293, %s288
          %s295 = smul.u32 %s26, 2
          %s296 = ssub.s32 1, %s295
          %s297 = smul.u32 %s294, %s296
          %s298 = sadd.s32 %s26, %s297
          %s299 = smul.u32 32, %s298
          %s301 = ssub.s32 4096, 4096
          %302 = vsyncadd %s279, %s301
          %s303 = smul.addr %s299, 128
          %s304 = scalar_lea.hbm %s2, %s303
          %s305 = sshll.u32 %s282, 4
          %s306 = int_to_ptr.vmem [resolvable:$true] %s305
          %311 = dma.hbm_to_vmem [thread:$0]  %s304, 4096, %s306, %s279, 128, 128, 8
        $region28: #{tpu_custom_call.1} parent=15 // pred_fallthru
          _
      $region16: #{tpu_custom_call.1} parent=5 // pred_fallthru
        _
      %p312 = scmp.le.s32.totalorder 1, %s18
      %p313 = scmp.lt.s32.totalorder %s18, 5
      %p314 = pnand %p312, %p313
      %p315 = pneg %p314
      // Predicated region
      $region29: #{tpu_custom_call.1} parent=5 // pred_check
        _
      $region30: #{tpu_custom_call.1} parent=5 // pred_check_branch
        %317 = sbr.rel (%p314) target = $region32
      $region31: #{tpu_custom_call.1} parent=5 // pred_region
        %s318 = ssub.s32 %s18, 1
        %s319 = sand.u32 %s43, 1
        %s320 = scalar_lea.sflag [#allocation4], %s319
        %s321 = sand.u32 %s43, 1
        %s322 = smul.addr %s321, 32
        %s323 = scalar_lea.vmem [#allocation3], %s322
        // Predicated region
        $region33: #{tpu_custom_call.1} parent=31 // pred_check
          %p324 = pneg %p56
        $region34: #{tpu_custom_call.1} parent=31 // pred_check_branch
          %326 = sbr.rel (%p324) target = $region36
        $region35: #{tpu_custom_call.1} parent=31 // pred_region
          %327 = dma.done %s320, 512
        $region36: #{tpu_custom_call.1} parent=31 // pred_fallthru
          _
        %s328 = sand.u32 %s23, 1
        %s329 = scalar_lea.sflag [#allocation7], %s328
        %s330 = sand.u32 %s101, 1
        %s331 = smul.addr %s330, 512
        %s332 = scalar_lea.vmem [#allocation6], %s331
        // Predicated region
        $region37: #{tpu_custom_call.1} parent=31 // pred_check
          %p333 = pneg %p114
        $region38: #{tpu_custom_call.1} parent=31 // pred_check_branch
          %335 = sbr.rel (%p333) target = $region40
        $region39: #{tpu_custom_call.1} parent=31 // pred_region
          %336 = dma.done %s329, 8192
        $region40: #{tpu_custom_call.1} parent=31 // pred_fallthru
          _
        %s337 = sand.u32 %s23, 1
        %s338 = scalar_lea.sflag [#allocation7], %s337
        %s339 = sand.u32 %s159, 1
        %s340 = smul.addr %s339, 256
        %s341 = scalar_lea.vmem [#allocation8], %s340
        // Predicated region
        $region41: #{tpu_custom_call.1} parent=31 // pred_check
          %p342 = pneg %p172
        $region42: #{tpu_custom_call.1} parent=31 // pred_check_branch
          %344 = sbr.rel (%p342) target = $region44
        $region43: #{tpu_custom_call.1} parent=31 // pred_region
          %345 = dma.done %s338, 4096
        $region44: #{tpu_custom_call.1} parent=31 // pred_fallthru
          _
        %s346 = sand.u32 %s43, 1
        %s347 = scalar_lea.sflag [#allocation4], %s346
        %s348 = sand.u32 %s43, 1
        %s349 = smul.addr %s348, 32
        %s350 = scalar_lea.vmem [#allocation3], %s349
        %p351 = pneg %p56
        %p352 = pneg %p53
        %s353 = sand.u32 %s23, 1
        %s354 = scalar_lea.sflag [#allocation7], %s353
        %s355 = sand.u32 %s101, 1
        %s356 = smul.addr %s355, 512
        %s357 = scalar_lea.vmem [#allocation6], %s356
        %p358 = pneg %p114
        %p359 = pneg %p111
        %s360 = sand.u32 %s23, 1
        %s361 = scalar_lea.sflag [#allocation7], %s360
        %s362 = sand.u32 %s159, 1
        %s363 = smul.addr %s362, 256
        %s364 = scalar_lea.vmem [#allocation8], %s363
        %p365 = pneg %p172
        %p366 = pneg %p169
        %p367 = pneg %p198
        %p368 = pneg %p195
        %s369 = sand.u32 %s185, 1
        %s370 = scalar_lea.sflag [#allocation5], %s369
        %s371 = sand.u32 %s185, 1
        %s372 = smul.addr %s371, 32
        %s373 = scalar_lea.vmem [#allocation9], %s372
        %s374 = smul.u32 4, %s27
        %p375 = scmp.lt.s32.totalorder %s27, 0
        %s376 = ssub.s32 0, %s27
        %s377 = scalar_select %p375, %s376, %s27
        %s378 = sand.u32 %s377, 1
        %s379 = ssub.s32 0, %s378
        %s380 = scalar_select %p375, %s379, %s378
        %p381 = scmp.ne.s32.totalorder %s380, 0
        %p382 = scmp.lt.s32.totalorder %s380, 0
        %p383 = pnand %p382, %p381
        %p384 = pneg %p383
        %s385 = sadd.s32 %s380, 2
        %s386 = scalar_select %p384, %s385, %s380
        %s387 = smul.u32 %s28, 2
        %s388 = ssub.s32 1, %s387
        %s389 = smul.u32 %s386, %s388
        %s390 = sadd.s32 %s28, %s389
        %s391 = smul.u32 4, %s390
        %p392 = scmp.lt.s32.totalorder %s27, 0
        %s393 = ssub.s32 0, %s27
        %s394 = scalar_select %p392, %s393, %s27
        %s395 = sand.u32 %s394, 1
        %s396 = ssub.s32 0, %s395
        %s397 = scalar_select %p392, %s396, %s395
        %p398 = scmp.ne.s32.totalorder %s397, 0
        %p399 = scmp.lt.s32.totalorder %s397, 0
        %p400 = pnand %p399, %p398
        %p401 = pneg %p400
        %s402 = sadd.s32 %s397, 2
        %s403 = scalar_select %p401, %s402, %s397
        %s404 = smul.u32 %s28, 2
        %s405 = ssub.s32 1, %s404
        %s406 = smul.u32 %s403, %s405
        %s407 = sadd.s32 %s28, %s406
        %s408 = smul.u32 32, %s407
        %s409 = smul.u32 4, %s27
        %v410 = vld [vmem:[%s323] sm:$0xff]
        %v411 = vld [vmem:[%s323 + $0x8] sm:$0xff]
        %v412 = vld [vmem:[%s323 + $0x10] sm:$0xff]
        %v413 = vld [vmem:[%s323 + $0x18] sm:$0xff]
        %v414 = vld [vmem:[%s332] sm:$0xff]
        %v415 = vld [vmem:[%s332 + $0x8] sm:$0xff]
        %v416 = vld [vmem:[%s332 + $0x10] sm:$0xff]
        %v417 = vld [vmem:[%s332 + $0x18] sm:$0xff]
        %v418 = vld [vmem:[%s332 + $0x20] sm:$0xff]
        %v419 = vld [vmem:[%s332 + $0x28] sm:$0xff]
        %v420 = vld [vmem:[%s332 + $0x30] sm:$0xff]
        %v421 = vld [vmem:[%s332 + $0x38] sm:$0xff]
        %v422 = vld [vmem:[%s332 + $0x40] sm:$0xff]
        %v423 = vld [vmem:[%s332 + $0x48] sm:$0xff]
        %v424 = vld [vmem:[%s332 + $0x50] sm:$0xff]
        %v425 = vld [vmem:[%s332 + $0x58] sm:$0xff]
        %v426 = vld [vmem:[%s332 + $0x60] sm:$0xff]
        %v427 = vld [vmem:[%s332 + $0x68] sm:$0xff]
        %v428 = vld [vmem:[%s332 + $0x70] sm:$0xff]
        %v429 = vld [vmem:[%s332 + $0x78] sm:$0xff]
        %v430 = vld [vmem:[%s332 + $0x80] sm:$0xff]
        %v431 = vld [vmem:[%s332 + $0x88] sm:$0xff]
        %v432 = vld [vmem:[%s332 + $0x90] sm:$0xff]
        %v433 = vld [vmem:[%s332 + $0x98] sm:$0xff]
        %v434 = vld [vmem:[%s332 + $0xa0] sm:$0xff]
        %v435 = vld [vmem:[%s332 + $0xa8] sm:$0xff]
        %v436 = vld [vmem:[%s332 + $0xb0] sm:$0xff]
        %v437 = vld [vmem:[%s332 + $0xb8] sm:$0xff]
        %v438 = vld [vmem:[%s332 + $0xc0] sm:$0xff]
        %v439 = vld [vmem:[%s332 + $0xc8] sm:$0xff]
        %v440 = vld [vmem:[%s332 + $0xd0] sm:$0xff]
        %v441 = vld [vmem:[%s332 + $0xd8] sm:$0xff]
        %v442 = vld [vmem:[%s332 + $0xe0] sm:$0xff]
        %v443 = vld [vmem:[%s332 + $0xe8] sm:$0xff]
        %v444 = vld [vmem:[%s332 + $0xf0] sm:$0xff]
        %v445 = vld [vmem:[%s332 + $0xf8] sm:$0xff]
        %v446 = vld [vmem:[%s332 + $0x100] sm:$0xff]
        %v447 = vld [vmem:[%s332 + $0x108] sm:$0xff]
        %v448 = vld [vmem:[%s332 + $0x110] sm:$0xff]
        %v449 = vld [vmem:[%s332 + $0x118] sm:$0xff]
        %v450 = vld [vmem:[%s332 + $0x120] sm:$0xff]
        %v451 = vld [vmem:[%s332 + $0x128] sm:$0xff]
        %v452 = vld [vmem:[%s332 + $0x130] sm:$0xff]
        %v453 = vld [vmem:[%s332 + $0x138] sm:$0xff]
        %v454 = vld [vmem:[%s332 + $0x140] sm:$0xff]
        %v455 = vld [vmem:[%s332 + $0x148] sm:$0xff]
        %v456 = vld [vmem:[%s332 + $0x150] sm:$0xff]
        %v457 = vld [vmem:[%s332 + $0x158] sm:$0xff]
        %v458 = vld [vmem:[%s332 + $0x160] sm:$0xff]
        %v459 = vld [vmem:[%s332 + $0x168] sm:$0xff]
        %v460 = vld [vmem:[%s332 + $0x170] sm:$0xff]
        %v461 = vld [vmem:[%s332 + $0x178] sm:$0xff]
        %v462 = vld [vmem:[%s332 + $0x180] sm:$0xff]
        %v463 = vld [vmem:[%s332 + $0x188] sm:$0xff]
        %v464 = vld [vmem:[%s332 + $0x190] sm:$0xff]
        %v465 = vld [vmem:[%s332 + $0x198] sm:$0xff]
        %v466 = vld [vmem:[%s332 + $0x1a0] sm:$0xff]
        %v467 = vld [vmem:[%s332 + $0x1a8] sm:$0xff]
        %v468 = vld [vmem:[%s332 + $0x1b0] sm:$0xff]
        %v469 = vld [vmem:[%s332 + $0x1b8] sm:$0xff]
        %v470 = vld [vmem:[%s332 + $0x1c0] sm:$0xff]
        %v471 = vld [vmem:[%s332 + $0x1c8] sm:$0xff]
        %v472 = vld [vmem:[%s332 + $0x1d0] sm:$0xff]
        %v473 = vld [vmem:[%s332 + $0x1d8] sm:$0xff]
        %v474 = vld [vmem:[%s332 + $0x1e0] sm:$0xff]
        %v475 = vld [vmem:[%s332 + $0x1e8] sm:$0xff]
        %v476 = vld [vmem:[%s332 + $0x1f0] sm:$0xff]
        %v477 = vld [vmem:[%s332 + $0x1f8] sm:$0xff]
        %478 = vmatprep.subr.mxu0 %v415
        %479 = vmatpush1.msra.mxu0 %v414
        %480 = vmatprep.subr.mxu0 %v419
        %481 = vmatpush1.msra.mxu0 %v418
        %482 = vmatprep.subr.mxu0 %v423
        %483 = vmatpush1.msra.mxu0 %v422
        %484 = vmatprep.subr.mxu0 %v427
        %485 = vmatpush1.msra.mxu0 %v426
        %486 = vmatprep.subr.mxu0 %v431
        %487 = vmatpush1.msra.mxu0 %v430
        %488 = vmatprep.subr.mxu0 %v435
        %489 = vmatpush1.msra.mxu0 %v434
        %490 = vmatprep.subr.mxu0 %v439
        %491 = vmatpush1.msra.mxu0 %v438
        %492 = vmatprep.subr.mxu0 %v443
        %493 = vmatpush1.msra.mxu0 %v442
        %494 = vmatprep.subr.mxu0 %v447
        %495 = vmatpush1.msra.mxu0 %v446
        %496 = vmatprep.subr.mxu0 %v451
        %497 = vmatpush1.msra.mxu0 %v450
        %498 = vmatprep.subr.mxu0 %v455
        %499 = vmatpush1.msra.mxu0 %v454
        %500 = vmatprep.subr.mxu0 %v459
        %501 = vmatpush1.msra.mxu0 %v458
        %502 = vmatprep.subr.mxu0 %v463
        %503 = vmatpush1.msra.mxu0 %v462
        %504 = vmatprep.subr.mxu0 %v467
        %505 = vmatpush1.msra.mxu0 %v466
        %506 = vmatprep.subr.mxu0 %v471
        %507 = vmatpush1.msra.mxu0 %v470
        %508 = vmatprep.subr.mxu0 %v475
        %509 = vmatpush1.msra.mxu0 %v474
        %510 = vmatprep.subr.mxu0 0.0
        %511 = vmatpush1.msra.mxu0 0.0
        %512 = vmatprep.subr.mxu0 0.0
        %513 = vmatpush1.msra.mxu0 0.0
        %514 = vmatprep.subr.mxu0 0.0
        %515 = vmatpush1.msra.mxu0 0.0
        %516 = vmatprep.subr.mxu0 0.0
        %517 = vmatpush1.msra.mxu0 0.0
        %518 = vmatprep.subr.mxu0 0.0
        %519 = vmatpush1.msra.mxu0 0.0
        %520 = vmatprep.subr.mxu0 0.0
        %521 = vmatpush1.msra.mxu0 0.0
        %522 = vmatprep.subr.mxu0 0.0
        %523 = vmatpush1.msra.mxu0 0.0
        %524 = vmatprep.subr.mxu0 0.0
        %525 = vmatpush1.msra.mxu0 0.0
        %526 = vmatprep.subr.mxu0 0.0
        %527 = vmatpush1.msra.mxu0 0.0
        %528 = vmatprep.subr.mxu0 0.0
        %529 = vmatpush1.msra.mxu0 0.0
        %530 = vmatprep.subr.mxu0 0.0
        %531 = vmatpush1.msra.mxu0 0.0
        %532 = vmatprep.subr.mxu0 0.0
        %533 = vmatpush1.msra.mxu0 0.0
        %534 = vmatprep.subr.mxu0 0.0
        %535 = vmatpush1.msra.mxu0 0.0
        %536 = vmatprep.subr.mxu0 0.0
        %537 = vmatpush1.msra.mxu0 0.0
        %538 = vmatprep.subr.mxu0 0.0
        %539 = vmatpush1.msra.mxu0 0.0
        %540 = vmatprep.subr.mxu0 0.0
        %541 = vmatpush1.msra.mxu0 0.0
        %542 = vmatprep.mubr.f32.mxu0 0.0
        %543 = vmatmul.mubr.f32.gmra.mrb[0].mxu0 %v410
        %v544 = vpop.f32.mrb[0].mxu0
        %v545 = vadd.f32 0.0, %v544
        %v546 = vpop.f32.mrb[0].mxu0
        %v547 = vadd.f32 0.0, %v546
        %548 = vmatprep.mubr.f32.mxu0 0.0
        %549 = vmatmul.mubr.f32.gmra.mrb[0].mxu0 %v411
        %v550 = vpop.f32.mrb[0].mxu0
        %v551 = vadd.f32 0.0, %v550
        %v552 = vpop.f32.mrb[0].mxu0
        %v553 = vadd.f32 0.0, %v552
        %554 = vmatprep.mubr.f32.mxu0 0.0
        %555 = vmatmul.mubr.f32.gmra.mrb[0].mxu0 %v412
        %v556 = vpop.f32.mrb[0].mxu0
        %v557 = vadd.f32 0.0, %v556
        %v558 = vpop.f32.mrb[0].mxu0
        %v559 = vadd.f32 0.0, %v558
        %560 = vmatprep.mubr.f32.mxu0 0.0
        %561 = vmatmul.mubr.f32.gmra.mrb[0].mxu0 %v413
        %v562 = vpop.f32.mrb[0].mxu0
        %v563 = vadd.f32 0.0, %v562
        %v564 = vpop.f32.mrb[0].mxu0
        %v565 = vadd.f32 0.0, %v564
        %566 = vdwg.mxu0
        %567 = vmatprep.subr.mxu0 %v417
        %568 = vmatpush1.msra.mxu0 %v416
        %569 = vmatprep.subr.mxu0 %v421
        %570 = vmatpush1.msra.mxu0 %v420
        %571 = vmatprep.subr.mxu0 %v425
        %572 = vmatpush1.msra.mxu0 %v424
        %573 = vmatprep.subr.mxu0 %v429
        %574 = vmatpush1.msra.mxu0 %v428
        %575 = vmatprep.subr.mxu0 %v433
        %576 = vmatpush1.msra.mxu0 %v432
        %577 = vmatprep.subr.mxu0 %v437
        %578 = vmatpush1.msra.mxu0 %v436
        %579 = vmatprep.subr.mxu0 %v441
        %580 = vmatpush1.msra.mxu0 %v440
        %581 = vmatprep.subr.mxu0 %v445
        %582 = vmatpush1.msra.mxu0 %v444
        %583 = vmatprep.subr.mxu0 %v449
        %584 = vmatpush1.msra.mxu0 %v448
        %585 = vmatprep.subr.mxu0 %v453
        %586 = vmatpush1.msra.mxu0 %v452
        %587 = vmatprep.subr.mxu0 %v457
        %588 = vmatpush1.msra.mxu0 %v456
        %589 = vmatprep.subr.mxu0 %v461
        %590 = vmatpush1.msra.mxu0 %v460
        %591 = vmatprep.subr.mxu0 %v465
        %592 = vmatpush1.msra.mxu0 %v464
        %593 = vmatprep.subr.mxu0 %v469
        %594 = vmatpush1.msra.mxu0 %v468
        %595 = vmatprep.subr.mxu0 %v473
        %596 = vmatpush1.msra.mxu0 %v472
        %597 = vmatprep.subr.mxu0 %v477
        %598 = vmatpush1.msra.mxu0 %v476
        %599 = vmatprep.subr.mxu0 0.0
        %600 = vmatpush1.msra.mxu0 0.0
        %601 = vmatprep.subr.mxu0 0.0
        %602 = vmatpush1.msra.mxu0 0.0
        %603 = vmatprep.subr.mxu0 0.0
        %604 = vmatpush1.msra.mxu0 0.0
        %605 = vmatprep.subr.mxu0 0.0
        %606 = vmatpush1.msra.mxu0 0.0
        %607 = vmatprep.subr.mxu0 0.0
        %608 = vmatpush1.msra.mxu0 0.0
        %609 = vmatprep.subr.mxu0 0.0
        %610 = vmatpush1.msra.mxu0 0.0
        %611 = vmatprep.subr.mxu0 0.0
        %612 = vmatpush1.msra.mxu0 0.0
        %613 = vmatprep.subr.mxu0 0.0
        %614 = vmatpush1.msra.mxu0 0.0
        %615 = vmatprep.subr.mxu0 0.0
        %616 = vmatpush1.msra.mxu0 0.0
        %617 = vmatprep.subr.mxu0 0.0
        %618 = vmatpush1.msra.mxu0 0.0
        %619 = vmatprep.subr.mxu0 0.0
        %620 = vmatpush1.msra.mxu0 0.0
        %621 = vmatprep.subr.mxu0 0.0
        %622 = vmatpush1.msra.mxu0 0.0
        %623 = vmatprep.subr.mxu0 0.0
        %624 = vmatpush1.msra.mxu0 0.0
        %625 = vmatprep.subr.mxu0 0.0
        %626 = vmatpush1.msra.mxu0 0.0
        %627 = vmatprep.subr.mxu0 0.0
        %628 = vmatpush1.msra.mxu0 0.0
        %629 = vmatprep.subr.mxu0 0.0
        %630 = vmatpush1.msra.mxu0 0.0
        %631 = vmatprep.mubr.f32.mxu0 0.0
        %632 = vmatmul.mubr.f32.gmra.mrb[0].mxu0 %v410
        %v633 = vpop.f32.mrb[0].mxu0
        %v634 = vadd.f32 0.0, %v633
        %v635 = vpop.f32.mrb[0].mxu0
        %v636 = vadd.f32 0.0, %v635
        %637 = vmatprep.mubr.f32.mxu0 0.0
        %638 = vmatmul.mubr.f32.gmra.mrb[0].mxu0 %v411
        %v639 = vpop.f32.mrb[0].mxu0
        %v640 = vadd.f32 0.0, %v639
        %v641 = vpop.f32.mrb[0].mxu0
        %v642 = vadd.f32 0.0, %v641
        %643 = vmatprep.mubr.f32.mxu0 0.0
        %644 = vmatmul.mubr.f32.gmra.mrb[0].mxu0 %v412
        %v645 = vpop.f32.mrb[0].mxu0
        %v646 = vadd.f32 0.0, %v645
        %v647 = vpop.f32.mrb[0].mxu0
        %v648 = vadd.f32 0.0, %v647
        %649 = vmatprep.mubr.f32.mxu0 0.0
        %650 = vmatmul.mubr.f32.gmra.mrb[0].mxu0 %v413
        %v651 = vpop.f32.mrb[0].mxu0
        %v652 = vadd.f32 0.0, %v651
        %v653 = vpop.f32.mrb[0].mxu0
        %v654 = vadd.f32 0.0, %v653
        %655 = vdwg.mxu0
        %v656 = vsub.f32 0.0, %v545
        %v657 = vsub.f32 0.0, %v547
        %v658 = vsub.f32 0.0, %v551
        %v659 = vsub.f32 0.0, %v553
        %v660 = vsub.f32 0.0, %v557
        %v661 = vsub.f32 0.0, %v559
        %v662 = vsub.f32 0.0, %v563
        %v663 = vsub.f32 0.0, %v565
        %v664 = vmul.f32 %v656, 1.442695
        %v665 = vpow.pop %v664
        %v666 = vmul.f32 %v657, 1.442695
        %v667 = vpow.pop %v666
        %v668 = vmul.f32 %v658, 1.442695
        %v669 = vpow.pop %v668
        %v670 = vmul.f32 %v659, 1.442695
        %v671 = vpow.pop %v670
        %v672 = vmul.f32 %v660, 1.442695
        %v673 = vpow.pop %v672
        %v674 = vmul.f32 %v661, 1.442695
        %v675 = vpow.pop %v674
        %v676 = vmul.f32 %v662, 1.442695
        %v677 = vpow.pop %v676
        %v678 = vmul.f32 %v663, 1.442695
        %v679 = vpow.pop %v678
        %v680 = vadd.f32 %v665, 1.0
        %v681 = vadd.f32 %v667, 1.0
        %v682 = vadd.f32 %v669, 1.0
        %v683 = vadd.f32 %v671, 1.0
        %v684 = vadd.f32 %v673, 1.0
        %v685 = vadd.f32 %v675, 1.0
        %v686 = vadd.f32 %v677, 1.0
        %v687 = vadd.f32 %v679, 1.0
        %v688 = vrcp.pop %v680
        %v689 = vrcp.pop %v681
        %v690 = vrcp.pop %v682
        %v691 = vrcp.pop %v683
        %v692 = vrcp.pop %v684
        %v693 = vrcp.pop %v685
        %v694 = vrcp.pop %v686
        %v695 = vrcp.pop %v687
        %v696 = vmul.f32 %v545, %v688
        %v697 = vmul.f32 %v547, %v689
        %v698 = vmul.f32 %v551, %v690
        %v699 = vmul.f32 %v553, %v691
        %v700 = vmul.f32 %v557, %v692
        %v701 = vmul.f32 %v559, %v693
        %v702 = vmul.f32 %v563, %v694
        %v703 = vmul.f32 %v565, %v695
        %v704 = vmul.f32 %v696, %v634
        %v705 = vmul.f32 %v697, %v636
        %v706 = vmul.f32 %v698, %v640
        %v707 = vmul.f32 %v699, %v642
        %v708 = vmul.f32 %v700, %v646
        %v709 = vmul.f32 %v701, %v648
        %v710 = vmul.f32 %v702, %v652
        %v711 = vmul.f32 %v703, %v654
        %v712 = vld [vmem:[%s341] sm:$0xff]
        %v713 = vld [vmem:[%s341 + $0x8] sm:$0xff]
        %v714 = vld [vmem:[%s341 + $0x10] sm:$0xff]
        %v715 = vld [vmem:[%s341 + $0x18] sm:$0xff]
        %v716 = vld [vmem:[%s341 + $0x20] sm:$0xff]
        %v717 = vld [vmem:[%s341 + $0x28] sm:$0xff]
        %v718 = vld [vmem:[%s341 + $0x30] sm:$0xff]
        %v719 = vld [vmem:[%s341 + $0x38] sm:$0xff]
        %v720 = vld [vmem:[%s341 + $0x40] sm:$0xff]
        %v721 = vld [vmem:[%s341 + $0x48] sm:$0xff]
        %v722 = vld [vmem:[%s341 + $0x50] sm:$0xff]
        %v723 = vld [vmem:[%s341 + $0x58] sm:$0xff]
        %v724 = vld [vmem:[%s341 + $0x60] sm:$0xff]
        %v725 = vld [vmem:[%s341 + $0x68] sm:$0xff]
        %v726 = vld [vmem:[%s341 + $0x70] sm:$0xff]
        %v727 = vld [vmem:[%s341 + $0x78] sm:$0xff]
        %v728 = vld [vmem:[%s341 + $0x80] sm:$0xff]
        %v729 = vld [vmem:[%s341 + $0x88] sm:$0xff]
        %v730 = vld [vmem:[%s341 + $0x90] sm:$0xff]
        %v731 = vld [vmem:[%s341 + $0x98] sm:$0xff]
        %v732 = vld [vmem:[%s341 + $0xa0] sm:$0xff]
        %v733 = vld [vmem:[%s341 + $0xa8] sm:$0xff]
        %v734 = vld [vmem:[%s341 + $0xb0] sm:$0xff]
        %v735 = vld [vmem:[%s341 + $0xb8] sm:$0xff]
        %v736 = vld [vmem:[%s341 + $0xc0] sm:$0xff]
        %v737 = vld [vmem:[%s341 + $0xc8] sm:$0xff]
        %v738 = vld [vmem:[%s341 + $0xd0] sm:$0xff]
        %v739 = vld [vmem:[%s341 + $0xd8] sm:$0xff]
        %v740 = vld [vmem:[%s341 + $0xe0] sm:$0xff]
        %v741 = vld [vmem:[%s341 + $0xe8] sm:$0xff]
        %v742 = vld [vmem:[%s341 + $0xf0] sm:$0xff]
        %v743 = vld [vmem:[%s341 + $0xf8] sm:$0xff]
        %744 = vmatprep.subr.mxu0 0.0
        %745 = vmatpush1.msra.mxu0 %v712
        %746 = vmatprep.subr.mxu0 0.0
        %747 = vmatpush1.msra.mxu0 %v713
        %748 = vmatprep.subr.mxu0 0.0
        %749 = vmatpush1.msra.mxu0 %v714
        %750 = vmatprep.subr.mxu0 0.0
        %751 = vmatpush1.msra.mxu0 %v715
        %752 = vmatprep.subr.mxu0 0.0
        %753 = vmatpush1.msra.mxu0 %v716
        %754 = vmatprep.subr.mxu0 0.0
        %755 = vmatpush1.msra.mxu0 %v717
        %756 = vmatprep.subr.mxu0 0.0
        %757 = vmatpush1.msra.mxu0 %v718
        %758 = vmatprep.subr.mxu0 0.0
        %759 = vmatpush1.msra.mxu0 %v719
        %760 = vmatprep.subr.mxu0 0.0
        %761 = vmatpush1.msra.mxu0 %v720
        %762 = vmatprep.subr.mxu0 0.0
        %763 = vmatpush1.msra.mxu0 %v721
        %764 = vmatprep.subr.mxu0 0.0
        %765 = vmatpush1.msra.mxu0 %v722
        %766 = vmatprep.subr.mxu0 0.0
        %767 = vmatpush1.msra.mxu0 %v723
        %768 = vmatprep.subr.mxu0 0.0
        %769 = vmatpush1.msra.mxu0 %v724
        %770 = vmatprep.subr.mxu0 0.0
        %771 = vmatpush1.msra.mxu0 %v725
        %772 = vmatprep.subr.mxu0 0.0
        %773 = vmatpush1.msra.mxu0 %v726
        %774 = vmatprep.subr.mxu0 0.0
        %775 = vmatpush1.msra.mxu0 %v727
        %776 = vmatprep.subr.mxu0 0.0
        %777 = vmatpush1.msra.mxu0 %v728
        %778 = vmatprep.subr.mxu0 0.0
        %779 = vmatpush1.msra.mxu0 %v729
        %780 = vmatprep.subr.mxu0 0.0
        %781 = vmatpush1.msra.mxu0 %v730
        %782 = vmatprep.subr.mxu0 0.0
        %783 = vmatpush1.msra.mxu0 %v731
        %784 = vmatprep.subr.mxu0 0.0
        %785 = vmatpush1.msra.mxu0 %v732
        %786 = vmatprep.subr.mxu0 0.0
        %787 = vmatpush1.msra.mxu0 %v733
        %788 = vmatprep.subr.mxu0 0.0
        %789 = vmatpush1.msra.mxu0 %v734
        %790 = vmatprep.subr.mxu0 0.0
        %791 = vmatpush1.msra.mxu0 %v735
        %792 = vmatprep.subr.mxu0 0.0
        %793 = vmatpush1.msra.mxu0 %v736
        %794 = vmatprep.subr.mxu0 0.0
        %795 = vmatpush1.msra.mxu0 %v737
        %796 = vmatprep.subr.mxu0 0.0
        %797 = vmatpush1.msra.mxu0 %v738
        %798 = vmatprep.subr.mxu0 0.0
        %799 = vmatpush1.msra.mxu0 %v739
        %800 = vmatprep.subr.mxu0 0.0
        %801 = vmatpush1.msra.mxu0 %v740
        %802 = vmatprep.subr.mxu0 0.0
        %803 = vmatpush1.msra.mxu0 %v741
        %804 = vmatprep.subr.mxu0 0.0
        %805 = vmatpush1.msra.mxu0 %v742
        %806 = vmatprep.subr.mxu0 0.0
        %807 = vmatpush1.msra.mxu0 %v743
        %808 = vmatprep.mubr.f32.mxu0 %v705
        %809 = vmatmul.mubr.f32.gmra.mrb[0].mxu0 %v704
        %v810 = vpop.f32.mrb[0].mxu0
        %v811 = vadd.f32 0.0, %v810
        %v812 = vpop.f32.mrb[0].mxu0
        %813 = vmatprep.mubr.f32.mxu0 %v707
        %814 = vmatmul.mubr.f32.gmra.mrb[0].mxu0 %v706
        %v815 = vpop.f32.mrb[0].mxu0
        %v816 = vadd.f32 0.0, %v815
        %v817 = vpop.f32.mrb[0].mxu0
        %818 = vmatprep.mubr.f32.mxu0 %v709
        %819 = vmatmul.mubr.f32.gmra.mrb[0].mxu0 %v708
        %v820 = vpop.f32.mrb[0].mxu0
        %v821 = vadd.f32 0.0, %v820
        %v822 = vpop.f32.mrb[0].mxu0
        %823 = vmatprep.mubr.f32.mxu0 %v711
        %824 = vmatmul.mubr.f32.gmra.mrb[0].mxu0 %v710
        %v825 = vpop.f32.mrb[0].mxu0
        %v826 = vadd.f32 0.0, %v825
        %v827 = vpop.f32.mrb[0].mxu0
        %828 = vdwg.mxu0
        %p829 = scmp.eq.s32.totalorder %s28, 0
        // Predicated region
        $region45: #{tpu_custom_call.1} parent=31 // pred_check
          %p830 = pneg %p829
        $region46: #{tpu_custom_call.1} parent=31 // pred_check_branch
          %832 = sbr.rel (%p830) target = $region48
        $region47: #{tpu_custom_call.1} parent=31 // pred_region
          %833 = vst [vmem:[#allocation2] sm:$0xff] %v811
          %834 = vst [vmem:[#allocation2 + $0x8] sm:$0xff] %v816
          %835 = vst [vmem:[#allocation2 + $0x10] sm:$0xff] %v821
          %836 = vst [vmem:[#allocation2 + $0x18] sm:$0xff] %v826
        $region48: #{tpu_custom_call.1} parent=31 // pred_fallthru
          _
        %p837 = scmp.gt.s32.totalorder %s28, 0
        %p838 = scmp.lt.s32.totalorder %s28, 1
        %p839 = pnand %p837, %p838
        %p840 = pneg %p839
        // Predicated region
        $region49: #{tpu_custom_call.1} parent=31 // pred_check
          _
        $region50: #{tpu_custom_call.1} parent=31 // pred_check_branch
          %842 = sbr.rel (%p839) target = $region52
        $region51: #{tpu_custom_call.1} parent=31 // pred_region
          %v843 = vld [vmem:[#allocation2] sm:$0xff]
          %v844 = vld [vmem:[#allocation2 + $0x8] sm:$0xff]
          %v845 = vld [vmem:[#allocation2 + $0x10] sm:$0xff]
          %v846 = vld [vmem:[#allocation2 + $0x18] sm:$0xff]
          %v847 = vadd.f32 %v843, %v811
          %v848 = vadd.f32 %v844, %v816
          %v849 = vadd.f32 %v845, %v821
          %v850 = vadd.f32 %v846, %v826
          %851 = vst [vmem:[#allocation2] sm:$0xff] %v847
          %852 = vst [vmem:[#allocation2 + $0x8] sm:$0xff] %v848
          %853 = vst [vmem:[#allocation2 + $0x10] sm:$0xff] %v849
          %854 = vst [vmem:[#allocation2 + $0x18] sm:$0xff] %v850
        $region52: #{tpu_custom_call.1} parent=31 // pred_fallthru
          _
        %p855 = scmp.eq.s32.totalorder %s28, 1
        // Predicated region
        $region53: #{tpu_custom_call.1} parent=31 // pred_check
          %p856 = pneg %p855
        $region54: #{tpu_custom_call.1} parent=31 // pred_check_branch
          %858 = sbr.rel (%p856) target = $region56
        $region55: #{tpu_custom_call.1} parent=31 // pred_region
          %v859 = vld [vmem:[#allocation2] sm:$0xff]
          %v860 = vld [vmem:[#allocation2 + $0x8] sm:$0xff]
          %v861 = vld [vmem:[#allocation2 + $0x10] sm:$0xff]
          %v862 = vld [vmem:[#allocation2 + $0x18] sm:$0xff]
          %v863 = vadd.f32 %v859, %v811
          %v864 = vadd.f32 %v860, %v816
          %v865 = vadd.f32 %v861, %v821
          %v866 = vadd.f32 %v862, %v826
          %867 = vst [vmem:[%s373] sm:$0xff] %v863
          %868 = vst [vmem:[%s373 + $0x8] sm:$0xff] %v864
          %869 = vst [vmem:[%s373 + $0x10] sm:$0xff] %v865
          %870 = vst [vmem:[%s373 + $0x18] sm:$0xff] %v866
        $region56: #{tpu_custom_call.1} parent=31 // pred_fallthru
          _
        %s871 = sand.u32 %s185, 1
        %s872 = scalar_lea.sflag [#allocation5], %s871
        %s873 = sand.u32 %s185, 1
        %s874 = smul.addr %s873, 32
        %s875 = scalar_lea.vmem [#allocation9], %s874
        // Predicated region
        $region57: #{tpu_custom_call.1} parent=31 // pred_check
          %p876 = pneg %p195
        $region58: #{tpu_custom_call.1} parent=31 // pred_check_branch
          %878 = sbr.rel (%p876) target = $region60
        $region59: #{tpu_custom_call.1} parent=31 // pred_region
          %s879 = smul.u32 4, %s27
          %s881 = ssub.s32 512, 512
          %882 = vsyncadd %s872, %s881
          %s883 = smul.addr %s879, 128
          %s884 = scalar_lea.hbm %s3, %s883
          %s885 = sshll.u32 %s875, 4
          %s886 = int_to_ptr.vmem [resolvable:$true] %s885
          %891 = dma.vmem_to_hbm [thread:$0]  %s886, 512, %s884, %s872, 128, 128, 8
        $region60: #{tpu_custom_call.1} parent=31 // pred_fallthru
          _
      $region32: #{tpu_custom_call.1} parent=5 // pred_fallthru
        _
      %p892 = scmp.le.s32.totalorder 2, %s18
      // Predicated region
      $region61: #{tpu_custom_call.1} parent=5 // pred_check
        %p893 = pneg %p892
      $region62: #{tpu_custom_call.1} parent=5 // pred_check_branch
        %895 = sbr.rel (%p893) target = $region64
      $region63: #{tpu_custom_call.1} parent=5 // pred_region
        %s896 = ssub.s32 %s18, 2
        // Predicated region
        $region65: #{tpu_custom_call.1} parent=63 // pred_check
          %p897 = pneg %p201
        $region66: #{tpu_custom_call.1} parent=63 // pred_check_branch
          %899 = sbr.rel (%p897) target = $region68
        $region67: #{tpu_custom_call.1} parent=63 // pred_region
          %s900 = sand.u32 %s186, 1
          %s901 = scalar_lea.sflag [#allocation5], %s900
          %s902 = sand.u32 %s186, 1
          %s903 = smul.addr %s902, 32
          %s904 = scalar_lea.vmem [#allocation9], %s903
          %905 = dma.done %s901, 512
        $region68: #{tpu_custom_call.1} parent=63 // pred_fallthru
          _
      $region64: #{tpu_custom_call.1} parent=5 // pred_fallthru
        _
    $region6: #{tpu_custom_call.1} parent=1 // loop_footer
      %s22 = sadd.s32 1, %s18
    $region7: #{tpu_custom_call.1} parent=1 // loop_footer_branch
      %17 = sbr.rel target = $region3
    $region8: #{tpu_custom_call.1} parent=1 // loop_exit
      _
    %906 = vsyncpa [#allocation4], 1
    %s907 = scalar_lea.sflag [#allocation4], 1
    %908 = vsyncpa %s907, 1
    %909 = vsyncpa [#allocation7], 1
    %s910 = scalar_lea.sflag [#allocation7], 1
    %911 = vsyncpa %s910, 1
    %912 = vsyncpa [#allocation5], 1
    %s913 = scalar_lea.sflag [#allocation5], 1
    %914 = vsyncpa %s913, 1

</llo_original>
